<compile_context>
chip_gen: v5e
topology: v5e:2x2
jax: 0.10.0
libtpu: 0.0.40
codegen_flags: <defaults>
</compile_context>

<pallas_src>
import functools

import jax
import jax.numpy as jnp
from jax.experimental import pallas as pl
from jax.experimental.pallas import tpu as pltpu


def _dropout_fc_kernel(*refs, has_mask, use_mxu):
    """o = dropout(x_last) @ W (+ b) for one row tile."""
    if has_mask:
        x_ref, mask_ref, w_ref, b_ref, o_ref = refs
    else:
        x_ref, w_ref, b_ref, o_ref = refs
        mask_ref = None

    x = x_ref[...]                                    # (TM, H)
    if has_mask:
        # mask is pre-scaled by 1/keep in the wrapper: one VPU multiply here.
        x = x * mask_ref[...]

    if use_mxu:
        # Weight arrives pre-transposed as (H, O): plain x @ W on the MXU.
        y = jnp.dot(x, w_ref[...], preferred_element_type=jnp.float32)   # (TM, O)
    else:
        # O == 1: VPU broadcast-multiply + lane reduction (skip MXU push/pop).
        y = jnp.sum(x * w_ref[...], axis=-1, keepdims=True)              # (TM, 1)

    o_ref[...] = (y + b_ref[...]).astype(o_ref.dtype)


def _choose_tile(batch, hidden, n_streams):
    """VMEM-aware row-tile size (multiple of 8 unless it equals the full B)."""
    SUB = 8
    budget = 4 << 20                      # per double-buffered f32 input stream
    per_row = hidden * 4 * 2              # one row, double-buffered
    cap = max(SUB, min(512, budget // max(per_row, 1)))
    cap = max(SUB, (cap // SUB) * SUB)
    if batch <= min(256, cap):
        return batch                      # single block; ==full-dim is legal
    # At least 2 grid steps (keeps both v7x TensorCores busy) and within cap.
    half = (((batch + 1) // 2) + SUB - 1) // SUB * SUB
    return max(SUB, min(cap, half))


@functools.partial(jax.jit, static_argnames=("training", "dropout_p"))
def base_rnn_forward(x, hidden, weight, bias, *, training=False,
                     dropout_p=0.5, seed=0):
    """Mirrors BaseRNN.forward: returns (fc(dropout(x))[-1], hidden).

    x:      (seq, batch, hidden)   time-major
    hidden: passed through untouched
    weight: (output_size, hidden)  torch Linear layout
    bias:   (output_size,)
    """
    S, B, H = x.shape
    O = weight.shape[0]

    use_mxu = O > 1
    has_mask = bool(training) and dropout_p > 0.0

    # One-time operand prep (fused under this jit).
    if use_mxu:
        w_in = weight.T                                            # (H, O)
        w_spec = pl.BlockSpec((H, O), lambda i: (0, 0))
    else:
        w_in = weight.reshape(1, H)                                # (1, H)
        w_spec = pl.BlockSpec((1, H), lambda i: (0, 0))
    b_in = bias.reshape(1, O)

    TM = _choose_tile(B, H, 2 if has_mask else 1)
    grid = (pl.cdiv(B, TM),)

    # Last-timestep select folded into the DMA: block index S-1 on the seq axis.
    in_arrays = [x]
    in_specs = [pl.BlockSpec((None, TM, H), lambda i: (S - 1, i, 0))]

    if has_mask:
        keep = 1.0 - dropout_p
        key = jax.random.PRNGKey(seed)
        mask = (jax.random.bernoulli(key, keep, (B, H)).astype(x.dtype)
                * jnp.asarray(1.0 / keep, dtype=x.dtype))          # (B, H)
        in_arrays.append(mask)
        in_specs.append(pl.BlockSpec((TM, H), lambda i: (i, 0)))

    in_arrays += [w_in, b_in]
    in_specs += [w_spec, pl.BlockSpec((1, O), lambda i: (0, 0))]

    n_streams = 2 if has_mask else 1
    itemsize = jnp.dtype(x.dtype).itemsize
    cost = pl.CostEstimate(
        flops=2 * B * H * O,
        transcendentals=0,
        bytes_accessed=(n_streams * B * H + B * O + H * O + O) * itemsize,
    )

    kernel = functools.partial(_dropout_fc_kernel,
                               has_mask=has_mask, use_mxu=use_mxu)

    out = pl.pallas_call(
        kernel,
        grid=grid,
        in_specs=in_specs,
        out_specs=pl.BlockSpec((TM, O), lambda i: (i, 0)),
        out_shape=jax.ShapeDtypeStruct((B, O), x.dtype),
        compiler_params=pltpu.CompilerParams(
            dimension_semantics=("parallel",),
        ),
        cost_estimate=cost,
    )(*in_arrays)

    return out, hidden


if __name__ == "__main__":
    key = jax.random.PRNGKey(0)
    seq, batch = 8, 2
    hidden_size, num_layers, output_size = 32, 4, 1

    k1, k2, k3, k4 = jax.random.split(key, 4)
    x = jax.random.normal(k1, (seq, batch, hidden_size), dtype=jnp.float32)
    h0 = jax.random.normal(k2, (num_layers, batch, hidden_size),
                           dtype=jnp.float32)

    # torch.nn.Linear-style init: U(-1/sqrt(H), 1/sqrt(H)).
    bound = 1.0 / (hidden_size ** 0.5)
    weight = jax.random.uniform(k3, (output_size, hidden_size),
                                minval=-bound, maxval=bound, dtype=jnp.float32)
    bias = jax.random.uniform(k4, (output_size,),
                              minval=-bound, maxval=bound, dtype=jnp.float32)

    # 1) Eval-mode forward (dropout = identity), matching model.eval().
    out, hid = base_rnn_forward(x, h0, weight, bias, training=False)
    jax.block_until_ready((out, hid))
    ref = x[-1] @ weight.T + bias
    assert out.shape == (batch, output_size)
    assert hid.shape == h0.shape
    assert jnp.allclose(out, ref, atol=1e-5, rtol=1e-5)

    # 2) Training-mode: check against a reference built from the same mask.
    seed_tr = 123
    out_tr, _ = base_rnn_forward(x, h0, weight, bias,
                                 training=True, dropout_p=0.5, seed=seed_tr)
    jax.block_until_ready(out_tr)
    mask_ref = (jax.random.bernoulli(jax.random.PRNGKey(seed_tr), 0.5,
                                     (batch, hidden_size)).astype(jnp.float32)
                * 2.0)
    ref_tr = (x[-1] * mask_ref) @ weight.T + bias
    assert out_tr.shape == (batch, output_size)
    assert bool(jnp.all(jnp.isfinite(out_tr)))
    assert jnp.allclose(out_tr, ref_tr, atol=1e-5, rtol=1e-5)

    # 3) MXU (O > 1) path.
    O2 = 4
    k5, k6 = jax.random.split(k4)
    w2 = jax.random.uniform(k5, (O2, hidden_size),
                            minval=-bound, maxval=bound, dtype=jnp.float32)
    b2 = jax.random.uniform(k6, (O2,), minval=-bound, maxval=bound,
                            dtype=jnp.float32)
    out2, _ = base_rnn_forward(x, h0, w2, b2, training=False)
    jax.block_until_ready(out2)
    ref2 = x[-1] @ w2.T + b2
    assert out2.shape == (batch, O2)
    assert jnp.allclose(out2, ref2, atol=1e-5, rtol=1e-5)

    # 4) Tiled path with a ragged last block (grid > 1, B not a multiple of 8).
    B_big = 600
    kb1, kb2 = jax.random.split(k5)
    x_big = jax.random.normal(kb1, (seq, B_big, hidden_size), dtype=jnp.float32)
    h_big = jax.random.normal(kb2, (num_layers, B_big, hidden_size),
                              dtype=jnp.float32)
    out_big, _ = base_rnn_forward(x_big, h_big, weight, bias, training=False)
    jax.block_until_ready(out_big)
    ref_big = x_big[-1] @ weight.T + bias
    assert out_big.shape == (B_big, output_size)
    assert jnp.allclose(out_big, ref_big, atol=1e-5, rtol=1e-5)

    print("KERNEL_OK")
</pallas_src>

<mosaic_0001>
module attributes {stable_mosaic.version = 11 : i64} {
  func.func @_dropout_fc_kernel(%arg0: i32, %arg1: memref<1x2x32xf32, #tpu.memory_space<vmem>>, %arg2: memref<1x32xf32, #tpu.memory_space<vmem>>, %arg3: memref<1x1xf32, #tpu.memory_space<vmem>>, %arg4: memref<2x1xf32, #tpu.memory_space<vmem>>) attributes {dimension_semantics = [#tpu.dimension_semantics<parallel>], iteration_bounds = array<i64: 1>, scalar_prefetch = 0 : i64, scratch_operands = 0 : i64, tpu.core_type = #tpu.core_type<tc>, window_params = [{transform_indices = @transform_0, window_bounds = array<i64: 1, 2, 32>}, {pipeline_mode = #tpu.pipeline_mode<synchronous>, transform_indices = @transform_1, window_bounds = array<i64: 1, 32>}, {pipeline_mode = #tpu.pipeline_mode<synchronous>, transform_indices = @transform_2, window_bounds = array<i64: 1, 1>}, {transform_indices = @transform_3, window_bounds = array<i64: 2, 1>}]} {
    %c0 = arith.constant 0 : index
    %c0_0 = arith.constant 0 : index
    %c0_1 = arith.constant 0 : index
    %0 = vector.load %arg1[%c0, %c0_0, %c0_1] : memref<1x2x32xf32, #tpu.memory_space<vmem>>, vector<1x2x32xf32>
    %1 = vector.shape_cast %0 : vector<1x2x32xf32> to vector<2x32xf32>
    %c0_2 = arith.constant 0 : index
    %c0_3 = arith.constant 0 : index
    %2 = vector.load %arg2[%c0_2, %c0_3] : memref<1x32xf32, #tpu.memory_space<vmem>>, vector<1x32xf32>
    %3 = vector.broadcast %2 : vector<1x32xf32> to vector<2x32xf32>
    %4 = arith.mulf %1, %3 : vector<2x32xf32>
    %cst = arith.constant dense<0.000000e+00> : vector<2xf32>
    %5 = vector.multi_reduction <add>, %4, %cst [1] : vector<2x32xf32> to vector<2xf32>
    %6 = vector.shape_cast %5 : vector<2xf32> to vector<2x1xf32>
    %c0_4 = arith.constant 0 : index
    %c0_5 = arith.constant 0 : index
    %7 = vector.load %arg3[%c0_4, %c0_5] : memref<1x1xf32, #tpu.memory_space<vmem>>, vector<1x1xf32>
    %8 = vector.broadcast %7 : vector<1x1xf32> to vector<2x1xf32>
    %9 = arith.addf %6, %8 : vector<2x1xf32>
    %c0_6 = arith.constant 0 : index
    %c0_7 = arith.constant 0 : index
    %10 = vector.load %arg4[%c0_6, %c0_7] : memref<2x1xf32, #tpu.memory_space<vmem>>, vector<2x1xf32>
    tpu.vector_store %arg4[%c0_6, %c0_7], %9 {strides = array<i32>} : memref<2x1xf32, #tpu.memory_space<vmem>>, vector<2x1xf32>,
    return
  }
  func.func @transform_0(%arg0: i32) -> (i32, i32, i32) {
    %c7_i32 = arith.constant 7 : i32
    %c0_i32 = arith.constant 0 : i32
    %c0_i32_0 = arith.constant 0 : i32
    return %c7_i32, %arg0, %c0_i32 : i32, i32, i32
  }
  func.func @transform_1(%arg0: i32) -> (i32, i32) {
    %c0_i32 = arith.constant 0 : i32
    %c0_i32_0 = arith.constant 0 : i32
    %c0_i32_1 = arith.constant 0 : i32
    return %c0_i32, %c0_i32_0 : i32, i32
  }
  func.func @transform_2(%arg0: i32) -> (i32, i32) {
    %c0_i32 = arith.constant 0 : i32
    %c0_i32_0 = arith.constant 0 : i32
    %c0_i32_1 = arith.constant 0 : i32
    return %c0_i32, %c0_i32_0 : i32, i32
  }
  func.func @transform_3(%arg0: i32) -> (i32, i32) {
    %c0_i32 = arith.constant 0 : i32
    %c0_i32_0 = arith.constant 0 : i32
    return %arg0, %c0_i32 : i32, i32
  }
}

</mosaic_0001>

<llo_original>
// kernel: base_rnn_forward.1
$region0: #{base_rnn_forward.1}
  #allocation0 [shape = 'u32[]', space=smem, size = 0x4, offset = 0x4, fixed_abs, tag = 'smem constant byte address 0x4 - core index']
  #allocation1 [shape = 'u32[72,128]{1,0:T(1,128)}', space=vmem, size = 0x9000, scoped, tag = 'internal scratch']
  #allocation2 [shape = 'f32[1,1]{1,0:T(1,128)S(1)}', space=vmem, size = 0x200, scoped, tag = 'scoped memory for base_rnn_forward.1']
  %s0 = inlined_call_operand.hbm [shape: f32[8,2,32], index: 0, kind: input, shape index: {}]
  %s1 = inlined_call_operand.vmem [shape: f32[1,32], index: 1, kind: input, shape index: {}]
  %s2 = inlined_call_operand.<no memory space> [shape: f32[1,1], index: 2, kind: input, shape index: {}]
  %s3 = inlined_call_operand.vmem [shape: f32[2,1], index: 3, kind: output, shape index: {}]
  %s4 = sld [smem:[#allocation0]]
  $region26: #{base_rnn_forward.1} parent=0
    _
  %s6 = ssub.s32 1, %s4
  %s7 = scalar_select 0, %s6, %s4
  %v8 = vstv %s2
  %9 = vst [vmem:[#allocation2] sm:$0x1] %v8
  $region1: #{base_rnn_forward.1} parent=0
    #allocation3 [shape = 'u8[1024]{0}', space=vmem, size = 0x400, scoped, tag = 'input window, operand 0, single buffered']
    #allocation4 [shape = 's32[1]{0}', space=sflag, size = 0x4, scoped, tag = 'scoped memory for base_rnn_forward.1']
    %10 = vsyncpa [#allocation4], 0
    // Predicated region
    $region2: #{base_rnn_forward.1} parent=1 // pred_check
      _
    $region3: #{base_rnn_forward.1} parent=1 // pred_check_branch
      %12 = sbr.rel (0) target = $region5
    $region4: #{base_rnn_forward.1} parent=1 // pred_region
      %14 = vsyncadd [#allocation4], 0
      %s15 = scalar_lea.hbm %s0, 14
      %s17 = sshll.u32 %s15, 4
      %s18 = int_to_ptr.hbm [resolvable:$true] %s17
      %s19 = sshll.u32 [#allocation3], 4
      %s20 = int_to_ptr.vmem [resolvable:$true] %s19
      %22 = dma.hbm_to_vmem [thread:$0]  %s18, 32, %s20, [#allocation4]
    $region5: #{base_rnn_forward.1} parent=1 // pred_fallthru
      _
    // Predicated region
    $region6: #{base_rnn_forward.1} parent=1 // pred_check
      _
    $region7: #{base_rnn_forward.1} parent=1 // pred_check_branch
      %24 = sbr.rel (0) target = $region9
    $region8: #{base_rnn_forward.1} parent=1 // pred_region
      _
    $region9: #{base_rnn_forward.1} parent=1 // pred_fallthru
      _
    // Predicated region
    $region10: #{base_rnn_forward.1} parent=1 // pred_check
      _
    $region11: #{base_rnn_forward.1} parent=1 // pred_check_branch
      %26 = sbr.rel (0) target = $region13
    $region12: #{base_rnn_forward.1} parent=1 // pred_region
      _
    $region13: #{base_rnn_forward.1} parent=1 // pred_fallthru
      _
    // Predicated region
    $region14: #{base_rnn_forward.1} parent=1 // pred_check
      _
    $region15: #{base_rnn_forward.1} parent=1 // pred_check_branch
      %28 = sbr.rel (0) target = $region17
    $region16: #{base_rnn_forward.1} parent=1 // pred_region
      %30 = dma.done [#allocation4], 32
    $region17: #{base_rnn_forward.1} parent=1 // pred_fallthru
      _
    %v31 = vld [vmem:[#allocation3] sm:$0x3]
    %v32 = vld [vmem:[%s1] sm:$0x1]
    %v34 = vperm.slane %v32, 0
    %v36 = vmul.f32 %v31, %v34
    %vm37 = vcmask 254976
    %v38 = vsel %vm37, %v36, 0.0
    %39 = vadd.xlane.f32.xlu0 %v38
    %v40 = vpop.xlane.xlu0 %39
    %v41 = vld [vmem:[#allocation2] sm:$0x1]
    %v43 = vperm.slane %v41, 0
    %v45 = vadd.f32 %v40, %v43
    %vm46 = vcmask 1024
    %47 = vst.msk [vmem:[%s3] sm:$0x3] %vm46, %v45
    // Predicated region
    $region18: #{base_rnn_forward.1} parent=1 // pred_check
      _
    $region19: #{base_rnn_forward.1} parent=1 // pred_check_branch
      %49 = sbr.rel (0) target = $region21
    $region20: #{base_rnn_forward.1} parent=1 // pred_region
      _
    $region21: #{base_rnn_forward.1} parent=1 // pred_fallthru
      _
    // Predicated region
    $region22: #{base_rnn_forward.1} parent=1 // pred_check
      _
    $region23: #{base_rnn_forward.1} parent=1 // pred_check_branch
      %51 = sbr.rel (0) target = $region25
    $region24: #{base_rnn_forward.1} parent=1 // pred_region
      _
    $region25: #{base_rnn_forward.1} parent=1 // pred_fallthru
      _
    %52 = vsyncpa [#allocation4], 1

</llo_original>
